<compile_context>
chip_gen: v5e
topology: v5e:2x2
jax: 0.10.0
libtpu: 0.0.40
codegen_flags: <defaults>
</compile_context>

<pallas_src>
import jax
import jax.numpy as jnp
from jax.experimental import pallas as pl
from jax.experimental.pallas import tpu as pltpu


def _round_up(x, m):
    return ((x + m - 1) // m) * m


def _policy_kernel(x_ref, w1_ref, w2_ref, w3_ref, b12_ref, b3_ref, out_ref):
    x = x_ref[...]
    h = jnp.dot(x, w1_ref[...], preferred_element_type=jnp.float32) + b12_ref[0:1, :]
    h = jnp.maximum(h, 0.0)
    h = jnp.dot(h, w2_ref[...], preferred_element_type=jnp.float32) + b12_ref[1:2, :]
    h = jnp.maximum(h, 0.0)
    m = jnp.dot(h, w3_ref[...], preferred_element_type=jnp.float32) + b3_ref[...]
    out_ref[...] = jnp.tanh(m)


def _policy_kernel_affine(x_ref, w1_ref, w2_ref, w3_ref, b12_ref, b3_ref, sb_ref,
                          out_ref):
    x = x_ref[...]
    h = jnp.dot(x, w1_ref[...], preferred_element_type=jnp.float32) + b12_ref[0:1, :]
    h = jnp.maximum(h, 0.0)
    h = jnp.dot(h, w2_ref[...], preferred_element_type=jnp.float32) + b12_ref[1:2, :]
    h = jnp.maximum(h, 0.0)
    m = jnp.dot(h, w3_ref[...], preferred_element_type=jnp.float32) + b3_ref[...]
    out_ref[...] = jnp.tanh(m) * sb_ref[0:1, :] + sb_ref[1:2, :]


def _choose_batch_tile(B, tile_b):
    # Multiple of 8 (sublane), capped at tile_b.
    TB = min(tile_b, _round_up(B, 8))
    # v7x: keep >= 2 grid steps for moderate batches so "parallel" can shard
    # the batch axis across both TensorCores.
    if B > 16:
        TB = min(TB, _round_up(-(-B // 2), 8))
    return TB


def deterministic_policy_forward(state, params, *, tile_b=1024):
    """state: [B, num_inputs] f32 -> mean: [B, num_actions] f32."""
    w1, b1, w2, b2, w3, b3, action_scale, action_bias = params
    B, num_inputs = state.shape
    H = w1.shape[1]
    A = w3.shape[1]

    TB = _choose_batch_tile(B, tile_b)
    grid = (pl.cdiv(B, TB),)

    # Pack the two hidden-layer biases into a single (2, H) operand.
    b12 = jnp.concatenate(
        [jnp.reshape(b1, (1, H)), jnp.reshape(b2, (1, H))], axis=0)
    b3_r = jnp.reshape(b3, (1, A))

    # Trace-time specialization: action_space is None -> scale=1, bias=0 ->
    # drop the affine epilogue and its operand entirely.
    trivial_affine = (
        isinstance(action_scale, (int, float))
        and isinstance(action_bias, (int, float))
        and float(action_scale) == 1.0
        and float(action_bias) == 0.0
    )

    const = lambda shape: pl.BlockSpec(shape, lambda i: (0,) * len(shape))
    in_specs = [
        pl.BlockSpec((TB, num_inputs), lambda i: (i, 0)),   # state (batch-tiled)
        const(w1.shape),
        const(w2.shape),
        const((H, A)),
        const((2, H)),
        const((1, A)),
    ]
    operands = [state, w1, w2, w3, b12, b3_r]
    kernel = _policy_kernel

    if not trivial_affine:
        scale = jnp.broadcast_to(
            jnp.reshape(jnp.asarray(action_scale, jnp.float32), (1, -1)), (1, A))
        bias = jnp.broadcast_to(
            jnp.reshape(jnp.asarray(action_bias, jnp.float32), (1, -1)), (1, A))
        sb = jnp.concatenate([scale, bias], axis=0)          # (2, A)
        in_specs.append(const((2, A)))
        operands.append(sb)
        kernel = _policy_kernel_affine

    return pl.pallas_call(
        kernel,
        out_shape=jax.ShapeDtypeStruct((B, A), jnp.float32),
        grid=grid,
        in_specs=in_specs,
        out_specs=pl.BlockSpec((TB, A), lambda i: (i, 0)),
        compiler_params=pltpu.CompilerParams(
            dimension_semantics=("parallel",)),
    )(*operands)


def xavier_uniform(key, fan_in, fan_out):
    # torch.nn.init.xavier_uniform_ with gain=1: U(-a, a), a = sqrt(6/(fan_in+fan_out))
    limit = jnp.sqrt(6.0 / (fan_in + fan_out))
    return jax.random.uniform(key, (fan_in, fan_out), jnp.float32, -limit, limit)


def init_params(key, num_inputs, num_actions, hidden_dim, action_space=None):
    """action_space: None, or a (low, high) tuple of arrays (conventional order)."""
    k1, k2, k3 = jax.random.split(key, 3)
    w1 = xavier_uniform(k1, num_inputs, hidden_dim)
    b1 = jnp.zeros((1, hidden_dim), jnp.float32)
    w2 = xavier_uniform(k2, hidden_dim, hidden_dim)
    b2 = jnp.zeros((1, hidden_dim), jnp.float32)
    w3 = xavier_uniform(k3, hidden_dim, num_actions)
    b3 = jnp.zeros((1, num_actions), jnp.float32)
    if action_space is None:
        action_scale, action_bias = 1.0, 0.0                 # matches torch module
    else:
        low, high = action_space
        action_scale = (high - low) / 2.0
        action_bias = (high + low) / 2.0
    return (w1, b1, w2, b2, w3, b3, action_scale, action_bias)


def reference_forward(state, params):
    w1, b1, w2, b2, w3, b3, scale, bias = params
    x = jnp.maximum(state @ w1 + b1, 0.0)
    x = jnp.maximum(x @ w2 + b2, 0.0)
    scale = jnp.asarray(scale, jnp.float32)
    bias = jnp.asarray(bias, jnp.float32)
    return jnp.tanh(x @ w3 + b3) * scale + bias


if __name__ == "__main__":
    num_inputs, num_actions, hidden_dim = 16, 4, 32

    key = jax.random.PRNGKey(0)
    k_state, k_params, k_state2, k_state3 = jax.random.split(key, 4)

    # Case 1: action_space is None -> scale/bias epilogue dropped at trace time.
    batch = 8
    state = jax.random.normal(k_state, (batch, num_inputs), jnp.float32)
    params = init_params(k_params, num_inputs, num_actions, hidden_dim)
    mean = jax.block_until_ready(deterministic_policy_forward(state, params))
    ref = reference_forward(state, params)
    assert mean.shape == (batch, num_actions)
    assert jnp.allclose(mean, ref, atol=1e-5, rtol=1e-5)

    # Case 2: non-trivial action_space + batch not a multiple of the sublane
    # tile (exercises the ragged edge block and the affine kernel variant).
    low = jnp.array([-2.0, -1.0, -1.0, -0.5], jnp.float32)
    high = jnp.array([2.0, 1.0, 3.0, 0.5], jnp.float32)
    params2 = init_params(k_params, num_inputs, num_actions, hidden_dim,
                          action_space=(low, high))
    state2 = jax.random.normal(k_state2, (5, num_inputs), jnp.float32)
    mean2 = jax.block_until_ready(deterministic_policy_forward(state2, params2))
    ref2 = reference_forward(state2, params2)
    assert mean2.shape == (5, num_actions)
    assert jnp.allclose(mean2, ref2, atol=1e-5, rtol=1e-5)

    # Case 3: batch large enough to force >= 2 grid steps with a ragged last
    # block (B=37 -> TB=24, grid=2) — checks the multi-tile + edge-mask path.
    state3 = jax.random.normal(k_state3, (37, num_inputs), jnp.float32)
    mean3 = jax.block_until_ready(deterministic_policy_forward(state3, params2))
    ref3 = reference_forward(state3, params2)
    assert mean3.shape == (37, num_actions)
    assert jnp.allclose(mean3, ref3, atol=1e-5, rtol=1e-5)

    # TODO(synk): sample()'s torch `.normal_` noise + clamp path stays host-side
    # (plain jax.random); only forward() (the deterministic mean) is kernelized.
    print("KERNEL_OK")
</pallas_src>

<mosaic_0001>
module attributes {stable_mosaic.version = 11 : i64} {
  func.func @_policy_kernel(%arg0: i32, %arg1: memref<8x16xf32, #tpu.memory_space<vmem>>, %arg2: memref<16x32xf32, #tpu.memory_space<vmem>>, %arg3: memref<32x32xf32, #tpu.memory_space<vmem>>, %arg4: memref<32x4xf32, #tpu.memory_space<vmem>>, %arg5: memref<2x32xf32, #tpu.memory_space<vmem>>, %arg6: memref<1x4xf32, #tpu.memory_space<vmem>>, %arg7: memref<8x4xf32, #tpu.memory_space<vmem>>) attributes {dimension_semantics = [#tpu.dimension_semantics<parallel>], iteration_bounds = array<i64: 1>, scalar_prefetch = 0 : i64, scratch_operands = 0 : i64, tpu.core_type = #tpu.core_type<tc>, window_params = [{transform_indices = @transform_0, window_bounds = array<i64: 8, 16>}, {pipeline_mode = #tpu.pipeline_mode<synchronous>, transform_indices = @transform_1, window_bounds = array<i64: 16, 32>}, {pipeline_mode = #tpu.pipeline_mode<synchronous>, transform_indices = @transform_2, window_bounds = array<i64: 32, 32>}, {pipeline_mode = #tpu.pipeline_mode<synchronous>, transform_indices = @transform_3, window_bounds = array<i64: 32, 4>}, {pipeline_mode = #tpu.pipeline_mode<synchronous>, transform_indices = @transform_4, window_bounds = array<i64: 2, 32>}, {pipeline_mode = #tpu.pipeline_mode<synchronous>, transform_indices = @transform_5, window_bounds = array<i64: 1, 4>}, {transform_indices = @transform_6, window_bounds = array<i64: 8, 4>}]} {
    %c0 = arith.constant 0 : index
    %c0_0 = arith.constant 0 : index
    %0 = vector.load %arg1[%c0, %c0_0] : memref<8x16xf32, #tpu.memory_space<vmem>>, vector<8x16xf32>
    %c0_1 = arith.constant 0 : index
    %c0_2 = arith.constant 0 : index
    %1 = vector.load %arg2[%c0_1, %c0_2] : memref<16x32xf32, #tpu.memory_space<vmem>>, vector<16x32xf32>
    %cst = arith.constant dense<0.000000e+00> : vector<8x32xf32>
    %2 = tpu.matmul %0, %1, %cst {dimension_numbers = #tpu.dot_dimension_numbers<[1], [0], [0], [1], [0, 0, 1, 1], [], []>} : vector<8x16xf32>, vector<16x32xf32>, vector<8x32xf32> -> vector<8x32xf32>
    %c0_3 = arith.constant 0 : index
    %c0_4 = arith.constant 0 : index
    %3 = vector.load %arg5[%c0_3, %c0_4] : memref<2x32xf32, #tpu.memory_space<vmem>>, vector<1x32xf32>
    %4 = vector.broadcast %3 : vector<1x32xf32> to vector<8x32xf32>
    %5 = arith.addf %2, %4 : vector<8x32xf32>
    %cst_5 = arith.constant 0.000000e+00 : f32
    %6 = vector.broadcast %cst_5 : f32 to vector<8x32xf32>
    %7 = arith.maximumf %5, %6 : vector<8x32xf32>
    %c0_6 = arith.constant 0 : index
    %c0_7 = arith.constant 0 : index
    %8 = vector.load %arg3[%c0_6, %c0_7] : memref<32x32xf32, #tpu.memory_space<vmem>>, vector<32x32xf32>
    %cst_8 = arith.constant dense<0.000000e+00> : vector<8x32xf32>
    %9 = tpu.matmul %7, %8, %cst_8 {dimension_numbers = #tpu.dot_dimension_numbers<[1], [0], [0], [1], [0, 0, 1, 1], [], []>} : vector<8x32xf32>, vector<32x32xf32>, vector<8x32xf32> -> vector<8x32xf32>
    %c1 = arith.constant 1 : index
    %c0_9 = arith.constant 0 : index
    %10 = vector.load %arg5[%c1, %c0_9] : memref<2x32xf32, #tpu.memory_space<vmem>>, vector<1x32xf32>
    %11 = vector.broadcast %10 : vector<1x32xf32> to vector<8x32xf32>
    %12 = arith.addf %9, %11 : vector<8x32xf32>
    %cst_10 = arith.constant 0.000000e+00 : f32
    %13 = vector.broadcast %cst_10 : f32 to vector<8x32xf32>
    %14 = arith.maximumf %12, %13 : vector<8x32xf32>
    %c0_11 = arith.constant 0 : index
    %c0_12 = arith.constant 0 : index
    %15 = vector.load %arg4[%c0_11, %c0_12] : memref<32x4xf32, #tpu.memory_space<vmem>>, vector<32x4xf32>
    %cst_13 = arith.constant dense<0.000000e+00> : vector<8x4xf32>
    %16 = tpu.matmul %14, %15, %cst_13 {dimension_numbers = #tpu.dot_dimension_numbers<[1], [0], [0], [1], [0, 0, 1, 1], [], []>} : vector<8x32xf32>, vector<32x4xf32>, vector<8x4xf32> -> vector<8x4xf32>
    %c0_14 = arith.constant 0 : index
    %c0_15 = arith.constant 0 : index
    %17 = vector.load %arg6[%c0_14, %c0_15] : memref<1x4xf32, #tpu.memory_space<vmem>>, vector<1x4xf32>
    %18 = vector.broadcast %17 : vector<1x4xf32> to vector<8x4xf32>
    %19 = arith.addf %16, %18 : vector<8x4xf32>
    %20 = math.tanh %19 : vector<8x4xf32>
    %c0_16 = arith.constant 0 : index
    %c0_17 = arith.constant 0 : index
    %21 = vector.load %arg7[%c0_16, %c0_17] : memref<8x4xf32, #tpu.memory_space<vmem>>, vector<8x4xf32>
    tpu.vector_store %arg7[%c0_16, %c0_17], %20 {strides = array<i32>} : memref<8x4xf32, #tpu.memory_space<vmem>>, vector<8x4xf32>,
    return
  }
  func.func @transform_0(%arg0: i32) -> (i32, i32) {
    %c0_i32 = arith.constant 0 : i32
    %c0_i32_0 = arith.constant 0 : i32
    return %arg0, %c0_i32 : i32, i32
  }
  func.func @transform_1(%arg0: i32) -> (i32, i32) {
    %c0_i32 = arith.constant 0 : i32
    %c0_i32_0 = arith.constant 0 : i32
    %c0_i32_1 = arith.constant 0 : i32
    return %c0_i32, %c0_i32_0 : i32, i32
  }
  func.func @transform_2(%arg0: i32) -> (i32, i32) {
    %c0_i32 = arith.constant 0 : i32
    %c0_i32_0 = arith.constant 0 : i32
    %c0_i32_1 = arith.constant 0 : i32
    return %c0_i32, %c0_i32_0 : i32, i32
  }
  func.func @transform_3(%arg0: i32) -> (i32, i32) {
    %c0_i32 = arith.constant 0 : i32
    %c0_i32_0 = arith.constant 0 : i32
    %c0_i32_1 = arith.constant 0 : i32
    return %c0_i32, %c0_i32_0 : i32, i32
  }
  func.func @transform_4(%arg0: i32) -> (i32, i32) {
    %c0_i32 = arith.constant 0 : i32
    %c0_i32_0 = arith.constant 0 : i32
    %c0_i32_1 = arith.constant 0 : i32
    return %c0_i32, %c0_i32_0 : i32, i32
  }
  func.func @transform_5(%arg0: i32) -> (i32, i32) {
    %c0_i32 = arith.constant 0 : i32
    %c0_i32_0 = arith.constant 0 : i32
    %c0_i32_1 = arith.constant 0 : i32
    return %c0_i32, %c0_i32_0 : i32, i32
  }
  func.func @transform_6(%arg0: i32) -> (i32, i32) {
    %c0_i32 = arith.constant 0 : i32
    %c0_i32_0 = arith.constant 0 : i32
    return %arg0, %c0_i32 : i32, i32
  }
}

</mosaic_0001>

<llo_original>
// kernel: tpu_custom_call.1
$region0: #{tpu_custom_call.1}
  #allocation0 [shape = 'u32[]', space=smem, size = 0x4, offset = 0x4, fixed_abs, tag = 'smem constant byte address 0x4 - core index']
  #allocation1 [shape = 'u32[72,128]{1,0:T(1,128)}', space=vmem, size = 0x9000, scoped, tag = 'internal scratch']
  %s0 = inlined_call_operand.hbm [shape: f32[8,16], index: 0, kind: input, shape index: {}]
  %s1 = inlined_call_operand.hbm [shape: f32[16,32], index: 1, kind: input, shape index: {}]
  %s2 = inlined_call_operand.vmem [shape: f32[32,32], index: 2, kind: input, shape index: {}]
  %s3 = inlined_call_operand.vmem [shape: f32[32,4], index: 3, kind: input, shape index: {}]
  %s4 = inlined_call_operand.vmem [shape: f32[2,32], index: 4, kind: input, shape index: {}]
  %s5 = inlined_call_operand.vmem [shape: f32[1,4], index: 5, kind: input, shape index: {}]
  %s6 = inlined_call_operand.vmem [shape: f32[8,4], index: 6, kind: output, shape index: {}]
  %s7 = sld [smem:[#allocation0]]
  $region42: #{tpu_custom_call.1} parent=0
    _
  %s9 = ssub.s32 1, %s7
  %s10 = scalar_select 0, %s9, %s7
  $region1: #{tpu_custom_call.1} parent=0
    #allocation2 [shape = 'u8[4096]{0}', space=vmem, size = 0x1000, scoped, tag = 'input window, operand 0, single buffered']
    #allocation3 [shape = 's32[1]{0}', space=sflag, size = 0x4, scoped, tag = 'scoped memory for tpu_custom_call.1']
    #allocation4 [shape = 'u8[8192]{0}', space=vmem, size = 0x2000, scoped, tag = 'input window, operand 1, single buffered']
    #allocation5 [shape = 's32[1]{0}', space=sflag, size = 0x4, scoped, tag = 'scoped memory for tpu_custom_call.1']
    %11 = vsyncpa [#allocation3], 0
    %12 = vsyncpa [#allocation5], 0
    // Predicated region
    $region2: #{tpu_custom_call.1} parent=1 // pred_check
      _
    $region3: #{tpu_custom_call.1} parent=1 // pred_check_branch
      %14 = sbr.rel (0) target = $region5
    $region4: #{tpu_custom_call.1} parent=1 // pred_region
      %16 = vsyncadd [#allocation3], 0
      %s18 = sshll.u32 %s0, 4
      %s19 = int_to_ptr.hbm [resolvable:$true] %s18
      %s20 = sshll.u32 [#allocation2], 4
      %s21 = int_to_ptr.vmem [resolvable:$true] %s20
      %23 = dma.hbm_to_vmem [thread:$0]  %s19, 128, %s21, [#allocation3]
    $region5: #{tpu_custom_call.1} parent=1 // pred_fallthru
      _
    // Predicated region
    $region6: #{tpu_custom_call.1} parent=1 // pred_check
      _
    $region7: #{tpu_custom_call.1} parent=1 // pred_check_branch
      %25 = sbr.rel (0) target = $region9
    $region8: #{tpu_custom_call.1} parent=1 // pred_region
      %27 = vsyncadd [#allocation5], 0
      %s28 = sshll.u32 %s1, 4
      %s29 = int_to_ptr.hbm [resolvable:$true] %s28
      %s30 = sshll.u32 [#allocation4], 4
      %s31 = int_to_ptr.vmem [resolvable:$true] %s30
      %36 = dma.hbm_to_vmem [thread:$0]  %s29, 256, %s31, [#allocation5], 128, 128, 8
    $region9: #{tpu_custom_call.1} parent=1 // pred_fallthru
      _
    // Predicated region
    $region10: #{tpu_custom_call.1} parent=1 // pred_check
      _
    $region11: #{tpu_custom_call.1} parent=1 // pred_check_branch
      %38 = sbr.rel (0) target = $region13
    $region12: #{tpu_custom_call.1} parent=1 // pred_region
      _
    $region13: #{tpu_custom_call.1} parent=1 // pred_fallthru
      _
    // Predicated region
    $region14: #{tpu_custom_call.1} parent=1 // pred_check
      _
    $region15: #{tpu_custom_call.1} parent=1 // pred_check_branch
      %40 = sbr.rel (0) target = $region17
    $region16: #{tpu_custom_call.1} parent=1 // pred_region
      _
    $region17: #{tpu_custom_call.1} parent=1 // pred_fallthru
      _
    // Predicated region
    $region18: #{tpu_custom_call.1} parent=1 // pred_check
      _
    $region19: #{tpu_custom_call.1} parent=1 // pred_check_branch
      %42 = sbr.rel (0) target = $region21
    $region20: #{tpu_custom_call.1} parent=1 // pred_region
      _
    $region21: #{tpu_custom_call.1} parent=1 // pred_fallthru
      _
    // Predicated region
    $region22: #{tpu_custom_call.1} parent=1 // pred_check
      _
    $region23: #{tpu_custom_call.1} parent=1 // pred_check_branch
      %44 = sbr.rel (0) target = $region25
    $region24: #{tpu_custom_call.1} parent=1 // pred_region
      _
    $region25: #{tpu_custom_call.1} parent=1 // pred_fallthru
      _
    // Predicated region
    $region26: #{tpu_custom_call.1} parent=1 // pred_check
      _
    $region27: #{tpu_custom_call.1} parent=1 // pred_check_branch
      %46 = sbr.rel (0) target = $region29
    $region28: #{tpu_custom_call.1} parent=1 // pred_region
      %48 = dma.done [#allocation3], 128
    $region29: #{tpu_custom_call.1} parent=1 // pred_fallthru
      _
    // Predicated region
    $region30: #{tpu_custom_call.1} parent=1 // pred_check
      _
    $region31: #{tpu_custom_call.1} parent=1 // pred_check_branch
      %50 = sbr.rel (0) target = $region33
    $region32: #{tpu_custom_call.1} parent=1 // pred_region
      %52 = dma.done [#allocation5], 256
    $region33: #{tpu_custom_call.1} parent=1 // pred_fallthru
      _
    %v53 = vld [vmem:[#allocation2] sm:$0xff]
    %v54 = vld [vmem:[#allocation4] sm:$0xff]
    %v55 = vld [vmem:[#allocation4 + $0x8] sm:$0xff]
    %v56 = vld [vmem:[%s4] sm:$0x1]
    %v57 = vperm.slane %v56, 0
    %vm58 = vcmask 130048
    %v60 = vsel %vm58, %v53, 0
    %62 = vmatpush.msra.mxu0 0.0
    %63 = vmatpush.msra.mxu0 0.0
    %64 = vmatpush.msra.mxu0 0.0
    %65 = vmatpush.msra.mxu0 0.0
    %66 = vmatpush.msra.mxu0 0.0
    %67 = vmatpush.msra.mxu0 0.0
    %68 = vmatpush.msra.mxu0 0.0
    %69 = vmatpush.msra.mxu0 0.0
    %70 = vmatpush.msra.mxu0 0.0
    %71 = vmatpush.msra.mxu0 0.0
    %72 = vmatpush.msra.mxu0 0.0
    %73 = vmatpush.msra.mxu0 0.0
    %74 = vmatpush.msra.mxu0 0.0
    %75 = vmatpush.msra.mxu0 0.0
    %76 = vmatpush.msra.mxu0 %v55
    %77 = vmatpush.msra.mxu0 %v54
    %78 = vmatmul.f32.gmra.mxu0 %v60
    %v79 = vpop.f32.mrf.mxu0
    %v80 = vadd.f32 %v57, %v79
    %81 = vdwg.mxu0
    %v82 = vmax.f32 %v80, 0.0
    %v83 = vld [vmem:[%s2] sm:$0xff]
    %v84 = vld [vmem:[%s2 + $0x8] sm:$0xff]
    %v85 = vld [vmem:[%s2 + $0x10] sm:$0xff]
    %v86 = vld [vmem:[%s2 + $0x18] sm:$0xff]
    %v87 = vld [vmem:[%s4 + $0x1] sm:$0x1]
    %v88 = vperm.slane %v87, 0
    %vm89 = vcmask 261120
    %v91 = vsel %vm89, %v82, 0
    %93 = vmatpush.msra.mxu0 0.0
    %94 = vmatpush.msra.mxu0 0.0
    %95 = vmatpush.msra.mxu0 0.0
    %96 = vmatpush.msra.mxu0 0.0
    %97 = vmatpush.msra.mxu0 0.0
    %98 = vmatpush.msra.mxu0 0.0
    %99 = vmatpush.msra.mxu0 0.0
    %100 = vmatpush.msra.mxu0 0.0
    %101 = vmatpush.msra.mxu0 0.0
    %102 = vmatpush.msra.mxu0 0.0
    %103 = vmatpush.msra.mxu0 0.0
    %104 = vmatpush.msra.mxu0 0.0
    %105 = vmatpush.msra.mxu0 %v86
    %106 = vmatpush.msra.mxu0 %v85
    %107 = vmatpush.msra.mxu0 %v84
    %108 = vmatpush.msra.mxu0 %v83
    %109 = vmatmul.f32.gmra.mxu0 %v91
    %v110 = vpop.f32.mrf.mxu0
    %v111 = vadd.f32 %v88, %v110
    %112 = vdwg.mxu0
    %v113 = vmax.f32 %v111, 0.0
    %v114 = vld [vmem:[%s3] sm:$0xff]
    %v115 = vld [vmem:[%s3 + $0x8] sm:$0xff]
    %v116 = vld [vmem:[%s3 + $0x10] sm:$0xff]
    %v117 = vld [vmem:[%s3 + $0x18] sm:$0xff]
    %v118 = vld [vmem:[%s5] sm:$0x1]
    %v120 = vperm.slane %v118, 0
    %v123 = vsel %vm89, %v113, 0
    %125 = vmatpush.msra.mxu0 0.0
    %126 = vmatpush.msra.mxu0 0.0
    %127 = vmatpush.msra.mxu0 0.0
    %128 = vmatpush.msra.mxu0 0.0
    %129 = vmatpush.msra.mxu0 0.0
    %130 = vmatpush.msra.mxu0 0.0
    %131 = vmatpush.msra.mxu0 0.0
    %132 = vmatpush.msra.mxu0 0.0
    %133 = vmatpush.msra.mxu0 0.0
    %134 = vmatpush.msra.mxu0 0.0
    %135 = vmatpush.msra.mxu0 0.0
    %136 = vmatpush.msra.mxu0 0.0
    %137 = vmatpush.msra.mxu0 %v117
    %138 = vmatpush.msra.mxu0 %v116
    %139 = vmatpush.msra.mxu0 %v115
    %140 = vmatpush.msra.mxu0 %v114
    %141 = vmatmul.f32.gmra.mxu0 %v123
    %v142 = vpop.f32.mrf.mxu0
    %v143 = vadd.f32 %v120, %v142
    %144 = vdwg.mxu0
    %v145 = vtanh.pop %v143
    %vm146 = vcmask 31744
    %147 = vst.msk [vmem:[%s6] sm:$0xff] %vm146, %v145
    // Predicated region
    $region34: #{tpu_custom_call.1} parent=1 // pred_check
      _
    $region35: #{tpu_custom_call.1} parent=1 // pred_check_branch
      %149 = sbr.rel (0) target = $region37
    $region36: #{tpu_custom_call.1} parent=1 // pred_region
      _
    $region37: #{tpu_custom_call.1} parent=1 // pred_fallthru
      _
    // Predicated region
    $region38: #{tpu_custom_call.1} parent=1 // pred_check
      _
    $region39: #{tpu_custom_call.1} parent=1 // pred_check_branch
      %151 = sbr.rel (0) target = $region41
    $region40: #{tpu_custom_call.1} parent=1 // pred_region
      _
    $region41: #{tpu_custom_call.1} parent=1 // pred_fallthru
      _
    %152 = vsyncpa [#allocation3], 1
    %153 = vsyncpa [#allocation5], 1

</llo_original>
